<compile_context>
chip_gen: v5e
topology: v5e:2x2
jax: 0.10.0
libtpu: 0.0.40
codegen_flags: <defaults>
</compile_context>

<pallas_src>
import functools

import numpy as np
import jax
import jax.numpy as jnp
from jax import lax
from jax.experimental import pallas as pl
from jax.experimental.pallas import tpu as pltpu


def _round_up(x, m):
    return (x + m - 1) // m * m


def _vmem_limit_bytes(need_bytes):
    """Budget ~3/4 of physical VMEM, but never below what the blocks actually
    need (+ headroom) so misconfiguration fails loudly instead of spilling."""
    try:
        cap = int(getattr(pltpu.get_tpu_info(), "vmem_capacity_bytes", 64 * 2**20))
    except Exception:  # pragma: no cover - conservative (v7x-sized) default
        cap = 64 * 2**20
    budget = (cap * 3) // 4
    return int(max(min(need_bytes + (2 << 20), budget),
                   need_bytes + (1 << 20),
                   16 << 20))


# ----------------------------------------------------------------------------
# Pallas kernel: per-(n, d) slab scatter (channel-last) + in-VMEM transpose
# to channel-major, so the HBM result is already in the final layout.
# ----------------------------------------------------------------------------
def _make_scatter_transpose_kernel(C, Cp, k, D, HWp):
    CH = min(HWp, 512)  # lane chunk for the aligned in-VMEM transpose

    def kernel(offs_ref, rvec_ref, feats_ref, out_ref, scratch_ref):
        # offs_ref   : SMEM int32 (N*D + 1,)   CSR offsets in packed-row units
        # rvec_ref   : SMEM int32 (Mp,)        per-voxel scratch row (h*W + x);
        #                                      HWp = sacrificial row for padding
        # feats_ref  : VMEM (Mp//k, k*C)       k voxels packed per 128-lane row
        # out_ref    : VMEM (C, HWp)           channel-major slab for this (n, d)
        # scratch_ref: VMEM (HWp + 8, Cp)      channel-last scatter target
        t = pl.program_id(0) * D + pl.program_id(1)

        # Fresh zero slab for this tile (scratch persists across grid steps).
        scratch_ref[...] = jnp.zeros_like(scratch_ref)

        start = offs_ref[t]
        end = offs_ref[t + 1]

        def body(pr, carry):
            packed = feats_ref[pl.ds(pr, 1), :]          # one (1, k*C) vector load
            base = pr * k
            for j in range(k):                            # static unroll: k voxels/row
                rr = rvec_ref[base + j]                   # single SMEM scalar / voxel
                scratch_ref[pl.ds(rr, 1), :C] = packed[:, j * C:(j + 1) * C]
            return carry

        lax.fori_loop(start, end, body, 0)

        # (HWp, Cp) -> (Cp, HWp) transpose in (8,128)-aligned chunks; keep only
        # the first C channel rows.  This replaces the XLA transpose HBM pass.
        for c0 in range(0, HWp, CH):
            cw = min(CH, HWp - c0)                        # always a multiple of 128
            blk = scratch_ref[c0:c0 + cw, :]              # (cw, Cp)
            out_ref[:, c0:c0 + cw] = blk.T[:C, :]

    return kernel


@functools.partial(jax.jit, static_argnames=("N", "D", "H", "W"))
def _densify_bev(feats, coords, *, N, D, H, W):
    """Sparse voxels -> dense (N, C*D, H, W) (== spconv .dense().view)."""
    M, C = feats.shape
    dtype = feats.dtype
    HW = H * W
    HWp = _round_up(HW, 128)                 # lane-dense output block
    Cp = _round_up(C, 128)                   # scratch lane width (aligned transpose)
    k = 128 // C if (C <= 128 and 128 % C == 0) else 1   # voxels per packed row
    num_tiles = N * D

    coords = coords.astype(jnp.int32)
    b, z, y, x = coords[:, 0], coords[:, 1], coords[:, 2], coords[:, 3]
    valid = ((b >= 0) & (b < N) & (z >= 0) & (z < D) &
             (y >= 0) & (y < H) & (x >= 0) & (x < W))

    # Scratch row inside the (n, d) slab.  Row HWp is a sacrificial row that is
    # never read back; the clip is OOB insurance (VMEM has no runtime bounds
    # check) since the in-kernel per-voxel guard was removed.
    r = jnp.where(valid, jnp.clip(y * W + x, 0, HW - 1), HWp).astype(jnp.int32)

    if num_tiles == 1:
        # Single slab: skip the argsort/gather/searchsorted bucketing entirely.
        Mp = max(_round_up(M, k), k)
        pad = Mp - M
        if pad:
            rvec = jnp.concatenate([r, jnp.full((pad,), HWp, jnp.int32)])
            feats_p = jnp.concatenate([feats, jnp.zeros((pad, C), dtype)])
        else:
            rvec, feats_p = r, feats
        offs = jnp.array([0, Mp // k], jnp.int32)
    else:
        # Bucket voxels by (n, d) slab; invalid voxels go to a dummy bucket past
        # the last tile.  Each bucket is padded to a multiple of k so the kernel
        # consumes whole packed feature rows with static lane slices.
        tile = jnp.where(valid, b * D + z, num_tiles).astype(jnp.int32)
        order = jnp.argsort(tile)
        tile_s = tile[order]
        offsets = jnp.searchsorted(
            tile_s, jnp.arange(num_tiles + 1, dtype=jnp.int32), side="left"
        ).astype(jnp.int32)
        counts = offsets[1:] - offsets[:-1]                       # per real tile
        pcounts = ((counts + (k - 1)) // k) * k
        poff = jnp.concatenate(
            [jnp.zeros((1,), jnp.int32), jnp.cumsum(pcounts, dtype=jnp.int32)])
        Mp = max(_round_up(M + num_tiles * (k - 1), k), k)        # static upper bound
        rank = jnp.arange(M, dtype=jnp.int32) - offsets[tile_s]
        dest = poff[tile_s] + rank          # dummy bucket lands past poff[-1] (< Mp)
        rvec = jnp.full((Mp,), HWp, jnp.int32).at[dest].set(r[order])
        feats_p = jnp.zeros((Mp, C), dtype).at[dest].set(feats[order])
        offs = (poff // k).astype(jnp.int32)                      # packed-row CSR

    # Pack k voxels per 128-lane row (removes the 8-16x lane padding a plain
    # (M, C) VMEM block would have) -- free reshape in XLA.
    feats_packed = feats_p.reshape(Mp // k, k * C)

    # VMEM accounting with lane/sublane padding, double buffering, and the
    # transpose chunk intermediate.
    itemsize = jnp.dtype(dtype).itemsize
    need = (2 * _round_up(Mp // k, 8) * _round_up(k * C, 128)      # feats (x2 bufs)
            + 2 * _round_up(C, 8) * HWp                            # out block (x2)
            + _round_up(HWp + 8, 8) * Cp                           # scratch
            + Cp * min(HWp, 512)) * itemsize                       # transpose temp

    out = pl.pallas_call(
        _make_scatter_transpose_kernel(C, Cp, k, D, HWp),
        out_shape=jax.ShapeDtypeStruct((N, C, D * HWp), dtype),
        grid_spec=pltpu.PrefetchScalarGridSpec(
            num_scalar_prefetch=2,                                 # offs, rvec
            grid=(N, D),
            in_specs=[
                # Packed features stay resident (constant block index -> no
                # per-step re-DMA).  See TODO(synk) above for production M.
                pl.BlockSpec((Mp // k, k * C),
                             lambda n, d, offs, rvec: (0, 0)),
            ],
            out_specs=pl.BlockSpec((None, C, HWp),
                                   lambda n, d, offs, rvec: (n, 0, d)),
            scratch_shapes=[pltpu.VMEM((HWp + 8, Cp), dtype)],
        ),
        compiler_params=pltpu.CompilerParams(
            dimension_semantics=("parallel", "parallel"),  # N*D slabs across TCs
            vmem_limit_bytes=_vmem_limit_bytes(need),
        ),
    )(offs, rvec, feats_packed)

    dense = out.reshape(N, C, D, HWp)
    if HWp != HW:
        # TODO(synk): only hit when H*W is not a multiple of 128; one extra XLA
        # slice to drop the lane padding.
        dense = dense[..., :HW]
    # (N, C, D, H*W) -> (N, C*D, H, W): pure metadata view, no extra HBM pass.
    return dense.reshape(N, C * D, H, W)


def sparse_to_bev(sp_tensor):
    """Densify a sparse voxel tensor and height-compress it to (N, C*D, H, W)."""
    feats = sp_tensor['features']
    coords = sp_tensor['indices']
    N = int(sp_tensor['batch_size'])
    D, H, W = (int(v) for v in sp_tensor['spatial_shape'])
    return _densify_bev(feats, coords, N=N, D=D, H=H, W=W)


# ----------------------------------------------------------------------------
# Module (no learnable parameters in the original nn.Module)
# ----------------------------------------------------------------------------
class HeightCompressionFPNStrongWeak:
    def __init__(self, model_cfg, **kwargs):
        self.model_cfg = model_cfg
        self.num_bev_features = model_cfg['NUM_BEV_FEATURES']
        self.num_bev_features_fpn_up = model_cfg.get('NUM_BEV_FEATURES_FPN_UP', [])
        self.num_bev_features_fpn_down = model_cfg.get('NUM_BEV_FEATURES_FPN_DOWN', [])
        self.num_bev_features_fpn_downup = model_cfg.get('NUM_BEV_FEATURES_FPN_DOWNUP', [])

    def forward(self, batch_dict):
        # main encoded tensor
        spatial_features = sparse_to_bev(batch_dict['encoded_spconv_tensor'])
        batch_dict['spatial_features'] = spatial_features
        batch_dict['spatial_features_stride'] = batch_dict['encoded_spconv_tensor_stride']

        # computed but unused in the reference forward (kept for fidelity)
        layers = ([str(3 - l) for l in range(len(self.num_bev_features_fpn_up))]
                  + [str(4 + 1 + l) for l in range(len(self.num_bev_features_fpn_down))]
                  + [str(4 + l) for l in range(len(self.num_bev_features_fpn_downup))])
        del layers

        batch_dict['spatial_features_multi'] = {}
        batch_dict['spatial_features_stride_multi'] = {}

        sf_x2 = sparse_to_bev(batch_dict['multi_scale_3d_features']['x_conv2'])
        sf_x4 = sparse_to_bev(batch_dict['multi_scale_3d_features']['x_conv4'])

        # Original module assigns the encoded tensor's stride to both levels.
        batch_dict['spatial_features_multi']['x_conv2'] = sf_x2
        batch_dict['spatial_features_stride_multi']['x_conv2'] = batch_dict['encoded_spconv_tensor_stride']
        batch_dict['spatial_features_multi']['x_conv4'] = sf_x4
        batch_dict['spatial_features_stride_multi']['x_conv4'] = batch_dict['encoded_spconv_tensor_stride']
        return batch_dict


# ----------------------------------------------------------------------------
# Helpers for building synthetic sparse tensors + a pure-JAX reference
# ----------------------------------------------------------------------------
def make_sparse_tensor(key, M, C, N, D, H, W):
    kf, kc = jax.random.split(key)
    feats = jax.random.normal(kf, (M, C), dtype=jnp.float32)
    # unique voxel locations so scatter order is irrelevant
    flat = jax.random.choice(kc, N * D * H * W, (M,), replace=False)
    b = flat // (D * H * W)
    z = (flat // (H * W)) % D
    y = (flat // W) % H
    x = flat % W
    coords = jnp.stack([b, z, y, x], axis=1).astype(jnp.int32)
    return {'features': feats, 'indices': coords,
            'spatial_shape': (D, H, W), 'batch_size': N}


def reference_bev(sp_tensor):
    feats = sp_tensor['features']
    coords = sp_tensor['indices']
    N = sp_tensor['batch_size']
    D, H, W = sp_tensor['spatial_shape']
    M, C = feats.shape
    dense = jnp.zeros((N, D, H, W, C), jnp.float32)
    b, z, y, x = coords[:, 0], coords[:, 1], coords[:, 2], coords[:, 3]
    dense = dense.at[b, z, y, x].set(feats)
    dense = jnp.transpose(dense, (0, 4, 1, 2, 3))  # (N, C, D, H, W)
    return dense.reshape(N, C * D, H, W)


# ----------------------------------------------------------------------------
if __name__ == "__main__":
    key = jax.random.PRNGKey(0)
    k1, k2, k3 = jax.random.split(key, 3)

    N = 2
    # encoded_spconv_tensor: C=16, D=2, H=W=16, M=64 voxels  -> BEV (2, 32, 16, 16)
    enc = make_sparse_tensor(k1, M=64, C=16, N=N, D=2, H=16, W=16)
    # x_conv2: C=8, D=4, H=W=32, M=96 voxels                 -> BEV (2, 32, 32, 32)
    x_conv2 = make_sparse_tensor(k2, M=96, C=8, N=N, D=4, H=32, W=32)
    # x_conv4: C=16, D=2, H=W=16, M=64 voxels                -> BEV (2, 32, 16, 16)
    x_conv4 = make_sparse_tensor(k3, M=64, C=16, N=N, D=2, H=16, W=16)

    model_cfg = {
        'NUM_BEV_FEATURES': 32,
        'NUM_BEV_FEATURES_FPN_UP': [32],
        'NUM_BEV_FEATURES_FPN_DOWN': [],
        'NUM_BEV_FEATURES_FPN_DOWNUP': [],
    }
    module = HeightCompressionFPNStrongWeak(model_cfg)

    batch_dict = {
        'encoded_spconv_tensor': enc,
        'encoded_spconv_tensor_stride': 8,
        'multi_scale_3d_features': {'x_conv2': x_conv2, 'x_conv4': x_conv4},
    }

    out = module.forward(batch_dict)
    jax.block_until_ready(out['spatial_features'])
    jax.block_until_ready(out['spatial_features_multi']['x_conv2'])
    jax.block_until_ready(out['spatial_features_multi']['x_conv4'])

    # correctness checks against pure-JAX reference of spconv .dense() + view
    # (duplicate voxel coords would be last-write-wins here; spconv guarantees
    # unique indices, and the synthetic inputs above are unique.)
    np.testing.assert_allclose(np.asarray(out['spatial_features']),
                               np.asarray(reference_bev(enc)), atol=1e-6)
    np.testing.assert_allclose(np.asarray(out['spatial_features_multi']['x_conv2']),
                               np.asarray(reference_bev(x_conv2)), atol=1e-6)
    np.testing.assert_allclose(np.asarray(out['spatial_features_multi']['x_conv4']),
                               np.asarray(reference_bev(x_conv4)), atol=1e-6)

    assert out['spatial_features'].shape == (2, 32, 16, 16)
    assert out['spatial_features_multi']['x_conv2'].shape == (2, 32, 32, 32)
    assert out['spatial_features_multi']['x_conv4'].shape == (2, 32, 16, 16)
    assert out['spatial_features_stride'] == 8

    print("KERNEL_OK")
</pallas_src>

<mosaic_0001>
module attributes {stable_mosaic.version = 11 : i64} {
  func.func @kernel(%arg0: i32, %arg1: i32, %arg2: memref<5xi32, #tpu.memory_space<smem>>, %arg3: memref<96xi32, #tpu.memory_space<smem>>, %arg4: memref<12x128xf32, #tpu.memory_space<vmem>>, %arg5: memref<1x16x256xf32, #tpu.memory_space<vmem>>, %arg6: memref<264x128xf32, #tpu.memory_space<vmem>>) attributes {dimension_semantics = [#tpu.dimension_semantics<parallel>, #tpu.dimension_semantics<parallel>], iteration_bounds = array<i64: 2, 2>, scalar_prefetch = 2 : i64, scratch_operands = 1 : i64, tpu.core_type = #tpu.core_type<tc>, window_params = [{pipeline_mode = #tpu.pipeline_mode<synchronous>, transform_indices = @transform_0, window_bounds = array<i64: 12, 128>}, {transform_indices = @transform_1, window_bounds = array<i64: 1, 16, 256>}]} {
    %c2_i32 = arith.constant 2 : i32
    %0 = arith.muli %arg0, %c2_i32 : i32
    %1 = arith.addi %0, %arg1 : i32
    %cst = arith.constant 0.000000e+00 : f32
    %2 = vector.broadcast %cst : f32 to vector<264x128xf32>
    %c0 = arith.constant 0 : index
    %c0_0 = arith.constant 0 : index
    %3 = vector.load %arg6[%c0, %c0_0] : memref<264x128xf32, #tpu.memory_space<vmem>>, vector<264x128xf32>
    tpu.vector_store %arg6[%c0, %c0_0], %2 {strides = array<i32>} : memref<264x128xf32, #tpu.memory_space<vmem>>, vector<264x128xf32>,
    %4 = arith.index_cast %1 : i32 to index
    %5 = memref.load %arg2[%4] : memref<5xi32, #tpu.memory_space<smem>>
    %c1_i32 = arith.constant 1 : i32
    %6 = arith.addi %1, %c1_i32 : i32
    %7 = arith.index_cast %6 : i32 to index
    %8 = memref.load %arg2[%7] : memref<5xi32, #tpu.memory_space<smem>>
    %c0_i32 = arith.constant 0 : i32
    %9 = arith.subi %8, %5 : i32
    %10 = arith.addi %5, %9 : i32
    %c1_i32_1 = arith.constant 1 : i32
    scf.for %arg7 = %5 to %10 step %c1_i32_1  : i32 {
      %17 = arith.index_cast %arg7 : i32 to index
      %c0_7 = arith.constant 0 : index
      %18 = vector.load %arg4[%17, %c0_7] : memref<12x128xf32, #tpu.memory_space<vmem>>, vector<1x128xf32>
      %c8_i32 = arith.constant 8 : i32
      %19 = arith.muli %arg7, %c8_i32 : i32
      %c0_i32_8 = arith.constant 0 : i32
      %20 = arith.addi %19, %c0_i32_8 : i32
      %21 = arith.index_cast %20 : i32 to index
      %22 = memref.load %arg3[%21] : memref<96xi32, #tpu.memory_space<smem>>
      %23 = vector.extract_strided_slice %18 {offsets = [0, 0], sizes = [1, 16], strides = [1, 1]} : vector<1x128xf32> to vector<1x16xf32>
      %24 = arith.index_cast %22 : i32 to index
      %c0_9 = arith.constant 0 : index
      %25 = vector.load %arg6[%24, %c0_9] : memref<264x128xf32, #tpu.memory_space<vmem>>, vector<1x16xf32>
      tpu.vector_store %arg6[%24, %c0_9], %23 {strides = array<i32>} : memref<264x128xf32, #tpu.memory_space<vmem>>, vector<1x16xf32>,
      %c1_i32_10 = arith.constant 1 : i32
      %26 = arith.addi %19, %c1_i32_10 : i32
      %27 = arith.index_cast %26 : i32 to index
      %28 = memref.load %arg3[%27] : memref<96xi32, #tpu.memory_space<smem>>
      %29 = vector.extract_strided_slice %18 {offsets = [0, 16], sizes = [1, 16], strides = [1, 1]} : vector<1x128xf32> to vector<1x16xf32>
      %30 = arith.index_cast %28 : i32 to index
      %c0_11 = arith.constant 0 : index
      %31 = vector.load %arg6[%30, %c0_11] : memref<264x128xf32, #tpu.memory_space<vmem>>, vector<1x16xf32>
      tpu.vector_store %arg6[%30, %c0_11], %29 {strides = array<i32>} : memref<264x128xf32, #tpu.memory_space<vmem>>, vector<1x16xf32>,
      %c2_i32_12 = arith.constant 2 : i32
      %32 = arith.addi %19, %c2_i32_12 : i32
      %33 = arith.index_cast %32 : i32 to index
      %34 = memref.load %arg3[%33] : memref<96xi32, #tpu.memory_space<smem>>
      %35 = vector.extract_strided_slice %18 {offsets = [0, 32], sizes = [1, 16], strides = [1, 1]} : vector<1x128xf32> to vector<1x16xf32>
      %36 = arith.index_cast %34 : i32 to index
      %c0_13 = arith.constant 0 : index
      %37 = vector.load %arg6[%36, %c0_13] : memref<264x128xf32, #tpu.memory_space<vmem>>, vector<1x16xf32>
      tpu.vector_store %arg6[%36, %c0_13], %35 {strides = array<i32>} : memref<264x128xf32, #tpu.memory_space<vmem>>, vector<1x16xf32>,
      %c3_i32 = arith.constant 3 : i32
      %38 = arith.addi %19, %c3_i32 : i32
      %39 = arith.index_cast %38 : i32 to index
      %40 = memref.load %arg3[%39] : memref<96xi32, #tpu.memory_space<smem>>
      %41 = vector.extract_strided_slice %18 {offsets = [0, 48], sizes = [1, 16], strides = [1, 1]} : vector<1x128xf32> to vector<1x16xf32>
      %42 = arith.index_cast %40 : i32 to index
      %c0_14 = arith.constant 0 : index
      %43 = vector.load %arg6[%42, %c0_14] : memref<264x128xf32, #tpu.memory_space<vmem>>, vector<1x16xf32>
      tpu.vector_store %arg6[%42, %c0_14], %41 {strides = array<i32>} : memref<264x128xf32, #tpu.memory_space<vmem>>, vector<1x16xf32>,
      %c4_i32 = arith.constant 4 : i32
      %44 = arith.addi %19, %c4_i32 : i32
      %45 = arith.index_cast %44 : i32 to index
      %46 = memref.load %arg3[%45] : memref<96xi32, #tpu.memory_space<smem>>
      %47 = vector.extract_strided_slice %18 {offsets = [0, 64], sizes = [1, 16], strides = [1, 1]} : vector<1x128xf32> to vector<1x16xf32>
      %48 = arith.index_cast %46 : i32 to index
      %c0_15 = arith.constant 0 : index
      %49 = vector.load %arg6[%48, %c0_15] : memref<264x128xf32, #tpu.memory_space<vmem>>, vector<1x16xf32>
      tpu.vector_store %arg6[%48, %c0_15], %47 {strides = array<i32>} : memref<264x128xf32, #tpu.memory_space<vmem>>, vector<1x16xf32>,
      %c5_i32 = arith.constant 5 : i32
      %50 = arith.addi %19, %c5_i32 : i32
      %51 = arith.index_cast %50 : i32 to index
      %52 = memref.load %arg3[%51] : memref<96xi32, #tpu.memory_space<smem>>
      %53 = vector.extract_strided_slice %18 {offsets = [0, 80], sizes = [1, 16], strides = [1, 1]} : vector<1x128xf32> to vector<1x16xf32>
      %54 = arith.index_cast %52 : i32 to index
      %c0_16 = arith.constant 0 : index
      %55 = vector.load %arg6[%54, %c0_16] : memref<264x128xf32, #tpu.memory_space<vmem>>, vector<1x16xf32>
      tpu.vector_store %arg6[%54, %c0_16], %53 {strides = array<i32>} : memref<264x128xf32, #tpu.memory_space<vmem>>, vector<1x16xf32>,
      %c6_i32 = arith.constant 6 : i32
      %56 = arith.addi %19, %c6_i32 : i32
      %57 = arith.index_cast %56 : i32 to index
      %58 = memref.load %arg3[%57] : memref<96xi32, #tpu.memory_space<smem>>
      %59 = vector.extract_strided_slice %18 {offsets = [0, 96], sizes = [1, 16], strides = [1, 1]} : vector<1x128xf32> to vector<1x16xf32>
      %60 = arith.index_cast %58 : i32 to index
      %c0_17 = arith.constant 0 : index
      %61 = vector.load %arg6[%60, %c0_17] : memref<264x128xf32, #tpu.memory_space<vmem>>, vector<1x16xf32>
      tpu.vector_store %arg6[%60, %c0_17], %59 {strides = array<i32>} : memref<264x128xf32, #tpu.memory_space<vmem>>, vector<1x16xf32>,
      %c7_i32 = arith.constant 7 : i32
      %62 = arith.addi %19, %c7_i32 : i32
      %63 = arith.index_cast %62 : i32 to index
      %64 = memref.load %arg3[%63] : memref<96xi32, #tpu.memory_space<smem>>
      %65 = vector.extract_strided_slice %18 {offsets = [0, 112], sizes = [1, 16], strides = [1, 1]} : vector<1x128xf32> to vector<1x16xf32>
      %66 = arith.index_cast %64 : i32 to index
      %c0_18 = arith.constant 0 : index
      %67 = vector.load %arg6[%66, %c0_18] : memref<264x128xf32, #tpu.memory_space<vmem>>, vector<1x16xf32>
      tpu.vector_store %arg6[%66, %c0_18], %65 {strides = array<i32>} : memref<264x128xf32, #tpu.memory_space<vmem>>, vector<1x16xf32>,
    }
    %c0_2 = arith.constant 0 : index
    %c0_3 = arith.constant 0 : index
    %11 = vector.load %arg6[%c0_2, %c0_3] : memref<264x128xf32, #tpu.memory_space<vmem>>, vector<256x128xf32>
    %12 = tpu.transpose %11, [1, 0] : vector<256x128xf32> -> vector<128x256xf32>
    %13 = vector.extract_strided_slice %12 {offsets = [0, 0], sizes = [16, 256], strides = [1, 1]} : vector<128x256xf32> to vector<16x256xf32>
    %c0_4 = arith.constant 0 : index
    %c0_5 = arith.constant 0 : index
    %c0_6 = arith.constant 0 : index
    %14 = vector.load %arg5[%c0_4, %c0_5, %c0_6] : memref<1x16x256xf32, #tpu.memory_space<vmem>>, vector<1x16x256xf32>
    %15 = vector.shape_cast %14 : vector<1x16x256xf32> to vector<16x256xf32>
    %16 = vector.shape_cast %13 : vector<16x256xf32> to vector<1x16x256xf32>
    tpu.vector_store %arg5[%c0_4, %c0_5, %c0_6], %16 {strides = array<i32>} : memref<1x16x256xf32, #tpu.memory_space<vmem>>, vector<1x16x256xf32>,
    return
  }
  func.func @transform_0(%arg0: i32, %arg1: i32, %arg2: memref<5xi32, #tpu.memory_space<smem>>, %arg3: memref<96xi32, #tpu.memory_space<smem>>) -> (i32, i32) {
    %c0_i32 = arith.constant 0 : i32
    %c0_i32_0 = arith.constant 0 : i32
    %c0_i32_1 = arith.constant 0 : i32
    return %c0_i32, %c0_i32_0 : i32, i32
  }
  func.func @transform_1(%arg0: i32, %arg1: i32, %arg2: memref<5xi32, #tpu.memory_space<smem>>, %arg3: memref<96xi32, #tpu.memory_space<smem>>) -> (i32, i32, i32) {
    %c0_i32 = arith.constant 0 : i32
    %c0_i32_0 = arith.constant 0 : i32
    return %arg0, %c0_i32, %arg1 : i32, i32, i32
  }
}

</mosaic_0001>

<llo_original>
// kernel: custom-call.1
$region0: #{custom-call.1}
  %s0 = inlined_call_operand.vmem [shape: u32[5], index: 0, kind: output, shape index: {}]

// kernel: _densify_bev.1
$region0: #{_densify_bev.1}
  #allocation0 [shape = 'u32[]', space=smem, size = 0x4, offset = 0x4, fixed_abs, tag = 'smem constant byte address 0x4 - core index']
  #allocation1 [shape = 'u32[72,128]{1,0:T(1,128)}', space=vmem, size = 0x9000, scoped, tag = 'internal scratch']
  #allocation2 [shape = 'f32[264,128]{1,0:T(8,128)}', space=vmem, size = 0x21000, scoped, tag = 'scratch operand']
  #allocation3 [shape = 's32[1]{0}', space=sflag, size = 0x4, scoped, tag = 'scoped memory for _densify_bev.1']
  #allocation4 [shape = 'u8[512]{0}', space=smem, size = 0x200, scoped, tag = 'prefetched SMEM operand 0']
  #allocation5 [shape = 'u8[512]{0}', space=smem, size = 0x200, scoped, tag = 'prefetched SMEM operand 1']
  %s0 = inlined_call_operand.vmem [shape: s32[5], index: 0, kind: input, shape index: {}]
  %s1 = inlined_call_operand.vmem [shape: s32[96], index: 1, kind: input, shape index: {}]
  %s2 = inlined_call_operand.vmem [shape: f32[12,128], index: 2, kind: input, shape index: {}]
  %s3 = inlined_call_operand.vmem [shape: f32[2,16,512], index: 3, kind: output, shape index: {}]
  %s4 = sld [smem:[#allocation0]]
  $region63: #{_densify_bev.1} parent=0
    _
  %s6 = ssub.s32 1, %s4
  %s7 = scalar_select 0, %s6, %s4
  %s9 = sshll.u32 %s0, 4
  %s10 = int_to_ptr.vmem [resolvable:$true] %s9
  %12 = dma.vmem_to_smem %s10, 16, [#allocation4], [#allocation3]
  %s14 = sshll.u32 %s1, 4
  %s15 = int_to_ptr.vmem [resolvable:$true] %s14
  %17 = dma.vmem_to_smem %s15, 16, [#allocation5], [#allocation3]
  %19 = dma.done [#allocation3], 32
  %20 = sfence
  $region1: #{_densify_bev.1} parent=0
    #allocation6 [shape = 'u8[32768]{0}', space=vmem, size = 0x8000, scoped, tag = 'output window, operand 0']
    loop: start=0, step=1, limit=6
    $region2: #{_densify_bev.1} parent=1 // loop_pre_header
      _
    $region3: #{_densify_bev.1} parent=1 // loop_header
      %s22 = sphi 0, %s26
      %p23 = scmp.ge.s32.totalorder %s22, 6
      %s29 = sphi 0, %s41
      %s30 = sphi 0, %s37
      %s31 = sphi 0, %s29
      %s32 = sphi 0, %s30
      %s33 = sphi 0, %s31
      %s34 = sphi 0, %s32
      %s42 = sphi 0, %s42
      %s44 = sphi 0, %s42
      %s45 = sphi 0, %s44
      %s59 = sphi 0, %s45
      %s67 = sphi 0, %s69
      %s70 = sphi 0, %s67
      %s71 = sphi 0, %s70
      %s87 = sphi 0, %s71
    $region4: #{_densify_bev.1} parent=1 // loop_header_branch
      %25 = sbr.rel (%p23) target = $region8
    $region5: #{_densify_bev.1} parent=1 // loop_body
      %s27 = ssub.s32 %s22, 1
      %s28 = ssub.s32 %s22, 2
      %s35 = sadd.s32 1, %s30
      %p36 = scmp.ge.s32.totalorder %s35, 2
      %s37 = scalar_select %p36, 0, %s35
      %s38 = sadd.s32 1, %s29
      %s39 = scalar_select %p36, %s38, %s29
      %p40 = scmp.ge.s32.totalorder %s39, 2
      %s41 = scalar_select %p40, 0, %s39
      %s43 = sadd.s32 %s42, 1
      %p46 = scmp.eq.s32.totalorder %s22, 3
      %p47 = scmp.ne.s32.totalorder %s42, %s44
      %p48 = scmp.eq.s32.totalorder %s22, 0
      %p49 = por %p47, %p48
      %p50 = scmp.ne.s32.totalorder %s42, %s44
      %p51 = scmp.eq.s32.totalorder %s27, 3
      %p52 = por %p50, %p51
      %p53 = scmp.ne.s32.totalorder %s44, %s45
      %p54 = scmp.eq.s32.totalorder %s27, 0
      %p55 = por %p53, %p54
      %p56 = scmp.ne.s32.totalorder %s44, %s45
      %p57 = scmp.eq.s32.totalorder %s28, 3
      %p58 = por %p56, %p57
      %p60 = scmp.ne.s32.totalorder %s45, %s59
      %p61 = scmp.eq.s32.totalorder %s28, 0
      %p62 = por %p60, %p61
      %s63 = ssub.s32 %s29, %s41
      %s64 = ssub.s32 %s30, %s37
      %s65 = sor.u32 %s63, %s64
      %p66 = scmp.eq.s32.totalorder %s65, 0
      %s68 = sadd.s32 %s67, 1
      %s69 = scalar_select %p66, %s67, %s68
      %p72 = pneg %p66
      %p73 = scmp.eq.s32.totalorder %s22, 3
      %p74 = por %p72, %p73
      %p75 = scmp.ne.s32.totalorder %s67, %s70
      %p76 = scmp.eq.s32.totalorder %s22, 0
      %p77 = por %p75, %p76
      %p78 = scmp.ne.s32.totalorder %s67, %s70
      %p79 = scmp.eq.s32.totalorder %s27, 3
      %p80 = por %p78, %p79
      %p81 = scmp.ne.s32.totalorder %s70, %s71
      %p82 = scmp.eq.s32.totalorder %s27, 0
      %p83 = por %p81, %p82
      %p84 = scmp.ne.s32.totalorder %s70, %s71
      %p85 = scmp.eq.s32.totalorder %s28, 3
      %p86 = por %p84, %p85
      %p88 = scmp.ne.s32.totalorder %s71, %s87
      %p89 = scmp.eq.s32.totalorder %s28, 0
      %p90 = por %p88, %p89
      %p91 = scmp.le.s32.totalorder 1, %s22
      %p92 = scmp.lt.s32.totalorder %s22, 5
      %p93 = pnand %p91, %p92
      %p94 = pneg %p93
      // Predicated region
      $region9: #{_densify_bev.1} parent=5 // pred_check
        _
      $region10: #{_densify_bev.1} parent=5 // pred_check_branch
        %96 = sbr.rel (%p93) target = $region12
      $region11: #{_densify_bev.1} parent=5 // pred_region
        %s97 = ssub.s32 %s22, 1
        // Predicated region
        $region13: #{_densify_bev.1} parent=11 // pred_check
          %p98 = pneg %p55
        $region14: #{_densify_bev.1} parent=11 // pred_check_branch
          %100 = sbr.rel (%p98) target = $region16
        $region15: #{_densify_bev.1} parent=11 // pred_region
          _
        $region16: #{_densify_bev.1} parent=11 // pred_fallthru
          _
      $region12: #{_densify_bev.1} parent=5 // pred_fallthru
        _
      %p101 = scmp.lt.s32.totalorder %s22, 4
      // Predicated region
      $region17: #{_densify_bev.1} parent=5 // pred_check
        %p102 = pneg %p101
      $region18: #{_densify_bev.1} parent=5 // pred_check_branch
        %104 = sbr.rel (%p102) target = $region20
      $region19: #{_densify_bev.1} parent=5 // pred_region
        _
      $region20: #{_densify_bev.1} parent=5 // pred_fallthru
        _
      %p105 = scmp.le.s32.totalorder 1, %s22
      %p106 = scmp.lt.s32.totalorder %s22, 5
      %p107 = pnand %p105, %p106
      %p108 = pneg %p107
      // Predicated region
      $region21: #{_densify_bev.1} parent=5 // pred_check
        _
      $region22: #{_densify_bev.1} parent=5 // pred_check_branch
        %110 = sbr.rel (%p107) target = $region24
      $region23: #{_densify_bev.1} parent=5 // pred_region
        %s111 = ssub.s32 %s22, 1
        %p112 = pneg %p55
        %p113 = pneg %p52
        %p114 = pneg %p83
        %p115 = pneg %p80
        %s116 = sand.u32 %s70, 1
        %s117 = sand.u32 %s70, 1
        %s118 = smul.addr %s117, 32
        %s119 = scalar_lea.vmem [#allocation6], %s118
        %s120 = smul.u32 2, %s32
        %s121 = smul.u32 %s31, 2
        %s122 = sadd.s32 %s121, %s32
        %123 = vst [vmem:[#allocation2] sm:$0xff] 0.0
        %124 = vst [vmem:[#allocation2 + $0x8] sm:$0xff] 0.0
        %125 = vst [vmem:[#allocation2 + $0x10] sm:$0xff] 0.0
        %126 = vst [vmem:[#allocation2 + $0x18] sm:$0xff] 0.0
        %127 = vst [vmem:[#allocation2 + $0x20] sm:$0xff] 0.0
        %128 = vst [vmem:[#allocation2 + $0x28] sm:$0xff] 0.0
        %129 = vst [vmem:[#allocation2 + $0x30] sm:$0xff] 0.0
        %130 = vst [vmem:[#allocation2 + $0x38] sm:$0xff] 0.0
        %131 = vst [vmem:[#allocation2 + $0x40] sm:$0xff] 0.0
        %132 = vst [vmem:[#allocation2 + $0x48] sm:$0xff] 0.0
        %133 = vst [vmem:[#allocation2 + $0x50] sm:$0xff] 0.0
        %134 = vst [vmem:[#allocation2 + $0x58] sm:$0xff] 0.0
        %135 = vst [vmem:[#allocation2 + $0x60] sm:$0xff] 0.0
        %136 = vst [vmem:[#allocation2 + $0x68] sm:$0xff] 0.0
        %137 = vst [vmem:[#allocation2 + $0x70] sm:$0xff] 0.0
        %138 = vst [vmem:[#allocation2 + $0x78] sm:$0xff] 0.0
        %139 = vst [vmem:[#allocation2 + $0x80] sm:$0xff] 0.0
        %140 = vst [vmem:[#allocation2 + $0x88] sm:$0xff] 0.0
        %141 = vst [vmem:[#allocation2 + $0x90] sm:$0xff] 0.0
        %142 = vst [vmem:[#allocation2 + $0x98] sm:$0xff] 0.0
        %143 = vst [vmem:[#allocation2 + $0xa0] sm:$0xff] 0.0
        %144 = vst [vmem:[#allocation2 + $0xa8] sm:$0xff] 0.0
        %145 = vst [vmem:[#allocation2 + $0xb0] sm:$0xff] 0.0
        %146 = vst [vmem:[#allocation2 + $0xb8] sm:$0xff] 0.0
        %147 = vst [vmem:[#allocation2 + $0xc0] sm:$0xff] 0.0
        %148 = vst [vmem:[#allocation2 + $0xc8] sm:$0xff] 0.0
        %149 = vst [vmem:[#allocation2 + $0xd0] sm:$0xff] 0.0
        %150 = vst [vmem:[#allocation2 + $0xd8] sm:$0xff] 0.0
        %151 = vst [vmem:[#allocation2 + $0xe0] sm:$0xff] 0.0
        %152 = vst [vmem:[#allocation2 + $0xe8] sm:$0xff] 0.0
        %153 = vst [vmem:[#allocation2 + $0xf0] sm:$0xff] 0.0
        %154 = vst [vmem:[#allocation2 + $0xf8] sm:$0xff] 0.0
        %155 = vst [vmem:[#allocation2 + $0x100] sm:$0xff] 0.0
        %s156 = sld [smem:[#allocation4 + %s122]]
        %s157 = sadd.s32 %s122, 1
        %s158 = sld [smem:[#allocation4 + %s157]]
        // While loop
        $region25: #{_densify_bev.1} parent=23 // loop_pre_header
          _
        $region26: #{_densify_bev.1} parent=23 // loop_header
          %s160 = sphi %s156, %s162
          %p161 = scmp.ge.s32.totalorder %s160, %s158
        $region27: #{_densify_bev.1} parent=23 // loop_header_branch
          %164 = sbr.rel (%p161) target = $region31
        $region28: #{_densify_bev.1} parent=23 // loop_body
          %s165 = scalar_lea.vmem %s2, %s160
          %v166 = vld [vmem:[%s165] sm:$0x1]
          %s167 = smul.u32 %s160, 8
          %s168 = sld [smem:[#allocation5 + %s167]]
          %s169 = scalar_lea.vmem [#allocation2], %s168
          %vm170 = vcmask 122880
          %171 = vst.msk [vmem:[%s169] sm:$0x1] %vm170, %v166
          %s172 = sadd.s32 %s167, 1
          %s173 = sld [smem:[#allocation5 + %s172]]
          %175 = vrot.lane.b32.xlu0 %v166, 112
          %v176 = vpop.permute.xlu0 %175
          %s178 = scalar_lea.vmem [#allocation2], %s173
          %179 = vst.msk [vmem:[%s178] sm:$0x1] %vm170, %v176
          %s180 = sadd.s32 %s167, 2
          %s181 = sld [smem:[#allocation5 + %s180]]
          %182 = vrot.lane.b32.xlu0 %v166, 96
          %v183 = vpop.permute.xlu0 %182
          %s185 = scalar_lea.vmem [#allocation2], %s181
          %186 = vst.msk [vmem:[%s185] sm:$0x1] %vm170, %v183
          %s187 = sadd.s32 %s167, 3
          %s188 = sld [smem:[#allocation5 + %s187]]
          %189 = vrot.lane.b32.xlu0 %v166, 80
          %v190 = vpop.permute.xlu0 %189
          %s192 = scalar_lea.vmem [#allocation2], %s188
          %193 = vst.msk [vmem:[%s192] sm:$0x1] %vm170, %v190
          %s194 = sadd.s32 %s167, 4
          %s195 = sld [smem:[#allocation5 + %s194]]
          %196 = vrot.lane.b32.xlu0 %v166, 64
          %v197 = vpop.permute.xlu0 %196
          %s199 = scalar_lea.vmem [#allocation2], %s195
          %200 = vst.msk [vmem:[%s199] sm:$0x1] %vm170, %v197
          %s201 = sadd.s32 %s167, 5
          %s202 = sld [smem:[#allocation5 + %s201]]
          %203 = vrot.lane.b32.xlu0 %v166, 48
          %v204 = vpop.permute.xlu0 %203
          %s206 = scalar_lea.vmem [#allocation2], %s202
          %207 = vst.msk [vmem:[%s206] sm:$0x1] %vm170, %v204
          %s208 = sadd.s32 %s167, 6
          %s209 = sld [smem:[#allocation5 + %s208]]
          %210 = vrot.lane.b32.xlu0 %v166, 32
          %v211 = vpop.permute.xlu0 %210
          %s213 = scalar_lea.vmem [#allocation2], %s209
          %214 = vst.msk [vmem:[%s213] sm:$0x1] %vm170, %v211
          %s215 = sadd.s32 %s167, 7
          %s216 = sld [smem:[#allocation5 + %s215]]
          %217 = vrot.lane.b32.xlu0 %v166, 16
          %v218 = vpop.permute.xlu0 %217
          %s220 = scalar_lea.vmem [#allocation2], %s216
          %221 = vst.msk [vmem:[%s220] sm:$0x1] %vm170, %v218
        $region29: #{_densify_bev.1} parent=23 // loop_footer
          %s162 = sadd.s32 %s160, 1
        $region30: #{_densify_bev.1} parent=23 // loop_footer_branch
          %159 = sbr.rel target = $region26
        $region31: #{_densify_bev.1} parent=23 // loop_exit
          _
        %v222 = vld [vmem:[#allocation2] sm:$0xff]
        %v223 = vld [vmem:[#allocation2 + $0x8] sm:$0xff]
        %v224 = vld [vmem:[#allocation2 + $0x10] sm:$0xff]
        %v225 = vld [vmem:[#allocation2 + $0x18] sm:$0xff]
        %v226 = vld [vmem:[#allocation2 + $0x20] sm:$0xff]
        %v227 = vld [vmem:[#allocation2 + $0x28] sm:$0xff]
        %v228 = vld [vmem:[#allocation2 + $0x30] sm:$0xff]
        %v229 = vld [vmem:[#allocation2 + $0x38] sm:$0xff]
        %v230 = vld [vmem:[#allocation2 + $0x40] sm:$0xff]
        %v231 = vld [vmem:[#allocation2 + $0x48] sm:$0xff]
        %v232 = vld [vmem:[#allocation2 + $0x50] sm:$0xff]
        %v233 = vld [vmem:[#allocation2 + $0x58] sm:$0xff]
        %v234 = vld [vmem:[#allocation2 + $0x60] sm:$0xff]
        %v235 = vld [vmem:[#allocation2 + $0x68] sm:$0xff]
        %v236 = vld [vmem:[#allocation2 + $0x70] sm:$0xff]
        %v237 = vld [vmem:[#allocation2 + $0x78] sm:$0xff]
        %v238 = vld [vmem:[#allocation2 + $0x80] sm:$0xff]
        %v239 = vld [vmem:[#allocation2 + $0x88] sm:$0xff]
        %v240 = vld [vmem:[#allocation2 + $0x90] sm:$0xff]
        %v241 = vld [vmem:[#allocation2 + $0x98] sm:$0xff]
        %v242 = vld [vmem:[#allocation2 + $0xa0] sm:$0xff]
        %v243 = vld [vmem:[#allocation2 + $0xa8] sm:$0xff]
        %v244 = vld [vmem:[#allocation2 + $0xb0] sm:$0xff]
        %v245 = vld [vmem:[#allocation2 + $0xb8] sm:$0xff]
        %v246 = vld [vmem:[#allocation2 + $0xc0] sm:$0xff]
        %v247 = vld [vmem:[#allocation2 + $0xc8] sm:$0xff]
        %v248 = vld [vmem:[#allocation2 + $0xd0] sm:$0xff]
        %v249 = vld [vmem:[#allocation2 + $0xd8] sm:$0xff]
        %v250 = vld [vmem:[#allocation2 + $0xe0] sm:$0xff]
        %v251 = vld [vmem:[#allocation2 + $0xe8] sm:$0xff]
        %v252 = vld [vmem:[#allocation2 + $0xf0] sm:$0xff]
        %v253 = vld [vmem:[#allocation2 + $0xf8] sm:$0xff]
        %254 = vxpose.xlu0.b32.start [1/16] %v222, 128
        %255 = vxpose.xlu0.b32.cont [2/16] %v223, 128
        %256 = vxpose.xlu0.b32.cont [3/16] %v224, 128
        %257 = vxpose.xlu0.b32.cont [4/16] %v225, 128
        %258 = vxpose.xlu0.b32.cont [5/16] %v226, 128
        %259 = vxpose.xlu0.b32.cont [6/16] %v227, 128
        %260 = vxpose.xlu0.b32.cont [7/16] %v228, 128
        %261 = vxpose.xlu0.b32.cont [8/16] %v229, 128
        %262 = vxpose.xlu0.b32.cont [9/16] %v230, 128
        %263 = vxpose.xlu0.b32.cont [10/16] %v231, 128
        %264 = vxpose.xlu0.b32.cont [11/16] %v232, 128
        %265 = vxpose.xlu0.b32.cont [12/16] %v233, 128
        %266 = vxpose.xlu0.b32.cont [13/16] %v234, 128
        %267 = vxpose.xlu0.b32.cont [14/16] %v235, 128
        %268 = vxpose.xlu0.b32.cont [15/16] %v236, 128
        %269 = vxpose.xlu0.b32.end [16/16] %v237, 128
        %v270 = vpop.trf.xlu0
        %v271 = vpop.trf.xlu0
        %v272 = vpop.trf.xlu0
        %v273 = vpop.trf.xlu0
        %v274 = vpop.trf.xlu0
        %v275 = vpop.trf.xlu0
        %v276 = vpop.trf.xlu0
        %v277 = vpop.trf.xlu0
        %v278 = vpop.trf.xlu0
        %v279 = vpop.trf.xlu0
        %v280 = vpop.trf.xlu0
        %v281 = vpop.trf.xlu0
        %v282 = vpop.trf.xlu0
        %v283 = vpop.trf.xlu0
        %v284 = vpop.trf.xlu0
        %v285 = vpop.trf.xlu0
        %286 = vxpose.xlu0.b32.start [1/16] %v238, 128
        %287 = vxpose.xlu0.b32.cont [2/16] %v239, 128
        %288 = vxpose.xlu0.b32.cont [3/16] %v240, 128
        %289 = vxpose.xlu0.b32.cont [4/16] %v241, 128
        %290 = vxpose.xlu0.b32.cont [5/16] %v242, 128
        %291 = vxpose.xlu0.b32.cont [6/16] %v243, 128
        %292 = vxpose.xlu0.b32.cont [7/16] %v244, 128
        %293 = vxpose.xlu0.b32.cont [8/16] %v245, 128
        %294 = vxpose.xlu0.b32.cont [9/16] %v246, 128
        %295 = vxpose.xlu0.b32.cont [10/16] %v247, 128
        %296 = vxpose.xlu0.b32.cont [11/16] %v248, 128
        %297 = vxpose.xlu0.b32.cont [12/16] %v249, 128
        %298 = vxpose.xlu0.b32.cont [13/16] %v250, 128
        %299 = vxpose.xlu0.b32.cont [14/16] %v251, 128
        %300 = vxpose.xlu0.b32.cont [15/16] %v252, 128
        %301 = vxpose.xlu0.b32.end [16/16] %v253, 128
        %v302 = vpop.trf.xlu0
        %v303 = vpop.trf.xlu0
        %v304 = vpop.trf.xlu0
        %v305 = vpop.trf.xlu0
        %v306 = vpop.trf.xlu0
        %v307 = vpop.trf.xlu0
        %v308 = vpop.trf.xlu0
        %v309 = vpop.trf.xlu0
        %v310 = vpop.trf.xlu0
        %v311 = vpop.trf.xlu0
        %v312 = vpop.trf.xlu0
        %v313 = vpop.trf.xlu0
        %v314 = vpop.trf.xlu0
        %v315 = vpop.trf.xlu0
        %v316 = vpop.trf.xlu0
        %v317 = vpop.trf.xlu0
        %318 = vst [vmem:[%s119] sm:$0xff] %v270
        %319 = vst [vmem:[%s119 + $0x8] sm:$0xff] %v302
        %320 = vst [vmem:[%s119 + $0x10] sm:$0xff] %v271
        %321 = vst [vmem:[%s119 + $0x18] sm:$0xff] %v303
        %s322 = sand.u32 %s70, 1
        %s323 = sand.u32 %s70, 1
        %s324 = smul.addr %s323, 32
        %s325 = scalar_lea.vmem [#allocation6], %s324
        // Predicated region
        $region32: #{_densify_bev.1} parent=23 // pred_check
          %p326 = pneg %p80
        $region33: #{_densify_bev.1} parent=23 // pred_check_branch
          %328 = sbr.rel (%p326) target = $region35
        $region34: #{_densify_bev.1} parent=23 // pred_region
          %s329 = smul.u32 2, %s32
          %s330 = smul.addr %s31, 8
          %s331 = sadd.s32 %s329, %s330
          %s332 = smul.addr %s331, 8
          %s333 = scalar_lea.vmem %s3, %s332
          // Predicated region
          $region36: #{_densify_bev.1} parent=34 // pred_check
            _
          $region37: #{_densify_bev.1} parent=34 // pred_check_branch
            %335 = sbr.rel (0) target = $region39
          $region38: #{_densify_bev.1} parent=34 // pred_region
            // Predicated region
            $region40: #{_densify_bev.1} parent=38 // pred_check
              _
            $region41: #{_densify_bev.1} parent=38 // pred_check_branch
              %337 = sbr.rel (0) target = $region43
            $region42: #{_densify_bev.1} parent=38 // pred_region
              loop: start=0, step=1, limit=1
              $region44: #{_densify_bev.1} parent=42 // loop_pre_header
                _
              $region45: #{_densify_bev.1} parent=42 // loop_header
                %s339 = sphi 0, %s343
                %p340 = scmp.ge.s32.totalorder %s339, 1
                %s344 = sphi %s325, %s325
                %s345 = sphi %s333, %s333
              $region46: #{_densify_bev.1} parent=42 // loop_header_branch
                %342 = sbr.rel (%p340) target = $region50
              $region47: #{_densify_bev.1} parent=42 // loop_body
                %v346 = vld [vmem:[%s344] sm:$0xff]
                %347 = vst [vmem:[%s345] sm:$0xff] %v346
                %v348 = vld [vmem:[%s344 + $0x8] sm:$0xff]
                %349 = vst [vmem:[%s345 + $0x8] sm:$0xff] %v348
                %v350 = vld [vmem:[%s344 + $0x10] sm:$0xff]
                %351 = vst [vmem:[%s345 + $0x20] sm:$0xff] %v350
                %v352 = vld [vmem:[%s344 + $0x18] sm:$0xff]
                %353 = vst [vmem:[%s345 + $0x28] sm:$0xff] %v352
              $region48: #{_densify_bev.1} parent=42 // loop_footer
                %s343 = sadd.s32 1, %s339
              $region49: #{_densify_bev.1} parent=42 // loop_footer_branch
                %338 = sbr.rel target = $region45
              $region50: #{_densify_bev.1} parent=42 // loop_exit
                _
            $region43: #{_densify_bev.1} parent=38 // pred_fallthru
              _
            // Predicated region
            $region51: #{_densify_bev.1} parent=38 // pred_check
              _
            $region52: #{_densify_bev.1} parent=38 // pred_check_branch
              %355 = sbr.rel target = $region54
            $region53: #{_densify_bev.1} parent=38 // pred_region
              _
            $region54: #{_densify_bev.1} parent=38 // pred_fallthru
              _
          $region39: #{_densify_bev.1} parent=34 // pred_fallthru
            _
          %356 = vnop
        $region35: #{_densify_bev.1} parent=23 // pred_fallthru
          _
      $region24: #{_densify_bev.1} parent=5 // pred_fallthru
        _
      %p357 = scmp.le.s32.totalorder 2, %s22
      // Predicated region
      $region55: #{_densify_bev.1} parent=5 // pred_check
        %p358 = pneg %p357
      $region56: #{_densify_bev.1} parent=5 // pred_check_branch
        %360 = sbr.rel (%p358) target = $region58
      $region57: #{_densify_bev.1} parent=5 // pred_region
        %s361 = ssub.s32 %s22, 2
        // Predicated region
        $region59: #{_densify_bev.1} parent=57 // pred_check
          %p362 = pneg %p86
        $region60: #{_densify_bev.1} parent=57 // pred_check_branch
          %364 = sbr.rel (%p362) target = $region62
        $region61: #{_densify_bev.1} parent=57 // pred_region
          %s365 = sand.u32 %s71, 1
          %s366 = sand.u32 %s71, 1
          %s367 = smul.addr %s366, 32
          %s368 = scalar_lea.vmem [#allocation6], %s367
        $region62: #{_densify_bev.1} parent=57 // pred_fallthru
          _
      $region58: #{_densify_bev.1} parent=5 // pred_fallthru
        _
    $region6: #{_densify_bev.1} parent=1 // loop_footer
      %s26 = sadd.s32 1, %s22
    $region7: #{_densify_bev.1} parent=1 // loop_footer_branch
      %21 = sbr.rel target = $region3
    $region8: #{_densify_bev.1} parent=1 // loop_exit
      _

</llo_original>
